<compile_context>
chip_gen: v6e
topology: v6e:2x2x1
jax: 0.10.0
libtpu: 0.0.40
codegen_flags: <defaults>
</compile_context>

<pallas_src>
import math

import jax
import jax.numpy as jnp
from jax.experimental import pallas as pl
from jax.experimental.pallas import tpu as pltpu  # noqa: F401  (TPU backend)


def _identity_copy_kernel(x_ref, o_ref):
    # Whole-block identity copy: VMEM -> vregs -> VMEM, one unmasked store
    # per lane-dense row group.
    o_ref[...] = x_ref[...]


def baseline_t_forward(sents, pargs=None):
    """Pallas implementation of BaselineT.forward: returns sents unchanged.

    pargs is accepted (to mirror the PyTorch signature) and ignored, exactly
    as in the reference module.

    NOTE: the truly optimal implementation is `return sents` with no kernel at
    all (zero ops, zero dispatch). The pallas_call below is the minimal-cost
    kernelized form: one full-block, lane-dense VMEM copy, no grid.
    """
    del pargs  # unused, exactly as in the reference module

    orig_shape = sents.shape
    total = math.prod(orig_shape) if orig_shape else 1

    # Present a lane-dense 2-D view so output stores are unmasked (last dim a
    # multiple of 128 whenever possible). Reshape is layout plumbing, not a copy.
    if total % 128 == 0:
        flat = sents.reshape(total // 128, 128)
    else:
        flat = sents.reshape(1, total)

    nbytes = total * flat.dtype.itemsize

    out_flat = pl.pallas_call(
        _identity_copy_kernel,
        out_shape=jax.ShapeDtypeStruct(flat.shape, flat.dtype),
        # Single full-array block resident in VMEM; no grid loop.
        in_specs=[pl.BlockSpec(flat.shape, lambda: (0, 0))],
        out_specs=pl.BlockSpec(flat.shape, lambda: (0, 0)),
        # Tell XLA's scheduler this call is essentially free (pure copy).
        cost_estimate=pl.CostEstimate(
            flops=0, transcendentals=0, bytes_accessed=2 * nbytes
        ),
    )(flat)

    return out_flat.reshape(orig_shape)


if __name__ == "__main__":
    key = jax.random.PRNGKey(0)
    k_sents, k_pargs = jax.random.split(key)

    batch, seq, embed_dim = 2, 8, 32
    sents = jax.random.normal(k_sents, (batch, seq, embed_dim), dtype=jnp.float32)
    # pargs: arbitrary auxiliary input, unused by the module (as in PyTorch ref).
    pargs = jax.random.normal(k_pargs, (batch, seq), dtype=jnp.float32)

    out = baseline_t_forward(sents, pargs)
    out = jax.block_until_ready(out)

    assert out.shape == sents.shape and out.dtype == sents.dtype
    assert bool(jnp.array_equal(out, sents))
    print("KERNEL_OK")
</pallas_src>

<mosaic_0001>
module attributes {stable_mosaic.version = 11 : i64} {
  func.func @_identity_copy_kernel(%arg0: memref<4x128xf32, #tpu.memory_space<vmem>>, %arg1: memref<4x128xf32, #tpu.memory_space<vmem>>) attributes {dimension_semantics = [], scalar_prefetch = 0 : i64, scratch_operands = 0 : i64, tpu.core_type = #tpu.core_type<tc>} {
    %c0 = arith.constant 0 : index
    %c0_0 = arith.constant 0 : index
    %0 = vector.load %arg0[%c0, %c0_0] : memref<4x128xf32, #tpu.memory_space<vmem>>, vector<4x128xf32>
    %c0_1 = arith.constant 0 : index
    %c0_2 = arith.constant 0 : index
    %1 = vector.load %arg1[%c0_1, %c0_2] : memref<4x128xf32, #tpu.memory_space<vmem>>, vector<4x128xf32>
    tpu.vector_store %arg1[%c0_1, %c0_2], %0 {strides = array<i32>} : memref<4x128xf32, #tpu.memory_space<vmem>>, vector<4x128xf32>,
    return
  }
}

</mosaic_0001>

<llo_original>
// kernel: tpu_custom_call.1
$region0: #{tpu_custom_call.1}
  #allocation0 [shape = 'u32[]', space=smem, size = 0x4, offset = 0x4, fixed_abs, tag = 'smem constant byte address 0x4 - core index']
  #allocation1 [shape = 'u32[144,128]{1,0:T(1,128)}', space=vmem, size = 0x12000, scoped, tag = 'internal scratch']
  %s0 = inlined_call_operand.hbm [shape: f32[4,128], index: 0, kind: input, shape index: {}]
  %s1 = inlined_call_operand.hbm [shape: f32[4,128], index: 1, kind: output, shape index: {}]
  %s2 = sld [smem:[#allocation0]]
  $region18: #{tpu_custom_call.1} parent=0
    _
  %s4 = ssub.s32 1, %s2
  %s5 = scalar_select 0, %s4, %s2
  $region1: #{tpu_custom_call.1} parent=0
    #allocation2 [shape = 'u8[2048]{0}', space=vmem, size = 0x800, scoped, tag = 'input window, operand 0, single buffered']
    #allocation3 [shape = 's32[1]{0}', space=sflag, size = 0x4, scoped, tag = 'scoped memory for tpu_custom_call.1']
    #allocation4 [shape = 's32[1]{0}', space=sflag, size = 0x4, scoped, tag = 'scoped memory for tpu_custom_call.1']
    #allocation5 [shape = 'u8[2048]{0}', space=vmem, size = 0x800, scoped, tag = 'output window, operand 0, single buffered']
    %6 = vsyncpa [#allocation3], 0
    %7 = vsyncpa [#allocation4], 0
    // Predicated region
    $region2: #{tpu_custom_call.1} parent=1 // pred_check
      _
    $region3: #{tpu_custom_call.1} parent=1 // pred_check_branch
      %9 = sbr.rel (0) target = $region5
    $region4: #{tpu_custom_call.1} parent=1 // pred_region
      %s11 = ssub.s32 64, 64
      %12 = vsyncadd [#allocation3], %s11
      %s14 = sshll.u32 [#allocation2], 4
      %s15 = int_to_ptr.vmem [resolvable:$true] %s14
      %17 = dma.hbm_to_vmem [thread:$0]  %s0, 64, %s15, [#allocation3]
    $region5: #{tpu_custom_call.1} parent=1 // pred_fallthru
      _
    // Predicated region
    $region6: #{tpu_custom_call.1} parent=1 // pred_check
      _
    $region7: #{tpu_custom_call.1} parent=1 // pred_check_branch
      %19 = sbr.rel (0) target = $region9
    $region8: #{tpu_custom_call.1} parent=1 // pred_region
      %20 = dma.done [#allocation3], 64
    $region9: #{tpu_custom_call.1} parent=1 // pred_fallthru
      _
    %v21 = vld [vmem:[#allocation2] sm:$0xf]
    %22 = vst [vmem:[#allocation5] sm:$0xf] %v21
    // Predicated region
    $region10: #{tpu_custom_call.1} parent=1 // pred_check
      _
    $region11: #{tpu_custom_call.1} parent=1 // pred_check_branch
      %24 = sbr.rel (0) target = $region13
    $region12: #{tpu_custom_call.1} parent=1 // pred_region
      %s26 = ssub.s32 64, 64
      %27 = vsyncadd [#allocation4], %s26
      %s29 = sshll.u32 [#allocation5], 4
      %s30 = int_to_ptr.vmem [resolvable:$true] %s29
      %32 = dma.vmem_to_hbm [thread:$0]  %s30, 64, %s1, [#allocation4]
    $region13: #{tpu_custom_call.1} parent=1 // pred_fallthru
      _
    // Predicated region
    $region14: #{tpu_custom_call.1} parent=1 // pred_check
      _
    $region15: #{tpu_custom_call.1} parent=1 // pred_check_branch
      %34 = sbr.rel (0) target = $region17
    $region16: #{tpu_custom_call.1} parent=1 // pred_region
      %35 = dma.done [#allocation4], 64
    $region17: #{tpu_custom_call.1} parent=1 // pred_fallthru
      _
    %36 = vsyncpa [#allocation3], 1
    %37 = vsyncpa [#allocation4], 1

</llo_original>
